<compile_context>
chip_gen: v5e
topology: v5e:2x2
jax: 0.10.0
libtpu: 0.0.40
codegen_flags: <defaults>
</compile_context>

<pallas_src>
import functools

import jax
import jax.numpy as jnp
from jax import lax
from jax.experimental import pallas as pl
from jax.experimental.pallas import tpu as pltpu


def _round_up(x: int, m: int) -> int:
    return ((x + m - 1) // m) * m


def _input_embedding_kernel(seed_ref, ids_ref, pid_ref, tok_ref, pos_ref, out_ref,
                            *, dropout_p: float, keep_threshold: int):
    """One grid step = one (TR, E) row-tile of the flattened (B*S, E) output.

    seed_ref : SMEM (1,)     int32   (scalar prefetch)
    ids_ref  : VMEM (TR, 1)  int32   token id per flattened row
    pid_ref  : VMEM (TR, 1)  int32   position id (row % S) per flattened row
    tok_ref  : VMEM (V, E)   float32 token embedding table
    pos_ref  : VMEM (S, E)   float32 positional embedding rows [0, S)
    out_ref  : VMEM (TR, E)  float32
    """
    TR, E = out_ref.shape
    V = tok_ref.shape[0]
    S = pos_ref.shape[0]

    ids = ids_ref[...]                                     # (TR, 1) int32
    pids = pid_ref[...]                                    # (TR, 1) int32

    # Vectorized gather: one-hot rows @ table on the MXU (exact: one nonzero
    # per row, HIGHEST precision).  Single pass over the whole block.
    tok_oh = (ids == lax.broadcasted_iota(jnp.int32, (TR, V), 1)).astype(jnp.float32)
    pos_oh = (pids == lax.broadcasted_iota(jnp.int32, (TR, S), 1)).astype(jnp.float32)
    val = jnp.dot(tok_oh, tok_ref[...],
                  preferred_element_type=jnp.float32,
                  precision=lax.Precision.HIGHEST)
    val = val + jnp.dot(pos_oh, pos_ref[...],
                        preferred_element_type=jnp.float32,
                        precision=lax.Precision.HIGHEST)

    # Inverted dropout, fused in-register (single store below, no read-back).
    if dropout_p > 0.0:
        row0 = pl.program_id(0) * TR
        ctr = ((row0 + lax.broadcasted_iota(jnp.int32, (TR, E), 0)) * E
               + lax.broadcasted_iota(jnp.int32, (TR, E), 1))
        x = ctr.astype(jnp.uint32)
        x = x + seed_ref[0].astype(jnp.uint32) * jnp.uint32(0x9E3779B9)
        # lowbias32-style integer mix (counter-based PRNG; pure VPU integer ops)
        x = x ^ (x >> 16)
        x = x * jnp.uint32(0x21F0AAAD)
        x = x ^ (x >> 15)
        x = x * jnp.uint32(0x735A2D97)
        x = x ^ (x >> 15)
        bits24 = (x >> 8).astype(jnp.int32)                # uniform on [0, 2^24)
        keep = bits24 >= keep_threshold                    # integer-space test
        scale = 1.0 / (1.0 - dropout_p)
        val = jnp.where(keep, val * scale, 0.0)

    out_ref[...] = val                                     # single unmasked store


def input_embedding_forward(ids, tok_table, pos_table, seed, *, dropout_p=0.1):
    """Pallas implementation of InputEmbedding.forward.

    ids       : (B, S) int32
    tok_table : (V, E) float32   -- firstEmbedding.weight
    pos_table : (V, E) float32   -- secondEmbedding.weight
    returns   : (B, S, E) float32
    """
    B, S = ids.shape
    V, E = tok_table.shape
    rows = B * S

    # Row tile: as large as reasonable (fewer grid steps, lane-dense stores),
    # always a multiple of 8 sublanes; pad the flattened row count to a multiple.
    TR = min(512, _round_up(rows, 8))
    R_pad = _round_up(rows, TR)
    grid = R_pad // TR

    flat_ids = ids.reshape(rows).astype(jnp.int32)
    pos_ids = jnp.tile(jnp.arange(S, dtype=jnp.int32), B)   # position = row % S
    if R_pad != rows:
        pad = R_pad - rows
        flat_ids = jnp.pad(flat_ids, (0, pad))
        pos_ids = jnp.pad(pos_ids, (0, pad))
    ids2 = flat_ids.reshape(R_pad, 1)
    pids2 = pos_ids.reshape(R_pad, 1)

    pos_slice = pos_table[:S].astype(jnp.float32)            # positions are arange(S)
    tok_tbl = tok_table.astype(jnp.float32)
    seed_arr = jnp.asarray([seed], dtype=jnp.int32)

    kernel = functools.partial(
        _input_embedding_kernel,
        dropout_p=float(dropout_p),
        keep_threshold=int(round(float(dropout_p) * (1 << 24))),
    )

    out_flat = pl.pallas_call(
        kernel,
        out_shape=jax.ShapeDtypeStruct((R_pad, E), jnp.float32),
        grid_spec=pltpu.PrefetchScalarGridSpec(
            num_scalar_prefetch=1,                           # seed -> SMEM
            grid=(grid,),
            in_specs=[
                pl.BlockSpec((TR, 1), lambda i, s: (i, 0)),  # token ids
                pl.BlockSpec((TR, 1), lambda i, s: (i, 0)),  # position ids
                # Constant-index table blocks. (On v7x with 64 MiB VMEM and a
                # bigger vocab, add pipeline_mode=pl.Buffered(1) here so the
                # constant tables are not double-buffered.)
                pl.BlockSpec((V, E), lambda i, s: (0, 0)),   # token table
                pl.BlockSpec((S, E), lambda i, s: (0, 0)),   # positional rows
            ],
            out_specs=pl.BlockSpec((TR, E), lambda i, s: (i, 0)),
        ),
        compiler_params=pltpu.CompilerParams(
            dimension_semantics=("parallel",),               # row tiles independent
            vmem_limit_bytes=64 * 1024 * 1024,
        ),
    )(seed_arr, ids2, pids2, tok_tbl, pos_slice)

    return out_flat[:rows].reshape(B, S, E)


if __name__ == "__main__":
    # Small, deterministic setup consistent with the module's __init__.
    input_vocab_size = 64
    embed_len = 128          # lane-aligned embedding width
    batch_size = 2
    seq_len = 8
    dropout_p = 0.1

    key = jax.random.PRNGKey(0)
    k_tok, k_pos, k_ids = jax.random.split(key, 3)

    # nn.Embedding initializes weights ~ N(0, 1)
    tok_table = jax.random.normal(k_tok, (input_vocab_size, embed_len), dtype=jnp.float32)
    pos_table = jax.random.normal(k_pos, (input_vocab_size, embed_len), dtype=jnp.float32)
    ids = jax.random.randint(k_ids, (batch_size, seq_len), 0, input_vocab_size,
                             dtype=jnp.int32)

    out = input_embedding_forward(ids, tok_table, pos_table, seed=123,
                                  dropout_p=dropout_p)
    jax.block_until_ready(out)
    assert out.shape == (batch_size, seq_len, embed_len)
    assert out.dtype == jnp.float32

    # Deterministic part: compare with dropout disabled against a pure-JAX reference.
    ref = tok_table[ids] + pos_table[jnp.arange(seq_len)][None, :, :]
    out_nodrop = input_embedding_forward(ids, tok_table, pos_table, seed=123,
                                         dropout_p=0.0)
    jax.block_until_ready(out_nodrop)
    assert jnp.allclose(out_nodrop, ref, atol=1e-5), "mismatch vs reference (no dropout)"

    # Dropout structure: every element is either exactly 0 or ref / (1 - p).
    kept_ok = jnp.abs(out * (1.0 - dropout_p) - ref) < 1e-4
    dropped = out == 0.0
    assert bool(jnp.all(kept_ok | dropped)), "dropout output not in {0, ref/(1-p)}"

    print("KERNEL_OK")
</pallas_src>

<mosaic_0001>
module attributes {stable_mosaic.version = 11 : i64} {
  func.func @_input_embedding_kernel(%arg0: i32, %arg1: memref<1xi32, #tpu.memory_space<smem>>, %arg2: memref<16x1xi32, #tpu.memory_space<vmem>>, %arg3: memref<16x1xi32, #tpu.memory_space<vmem>>, %arg4: memref<64x128xf32, #tpu.memory_space<vmem>>, %arg5: memref<8x128xf32, #tpu.memory_space<vmem>>, %arg6: memref<16x128xf32, #tpu.memory_space<vmem>>) attributes {dimension_semantics = [#tpu.dimension_semantics<parallel>], iteration_bounds = array<i64: 1>, scalar_prefetch = 1 : i64, scratch_operands = 0 : i64, tpu.core_type = #tpu.core_type<tc>, window_params = [{transform_indices = @transform_0, window_bounds = array<i64: 16, 1>}, {transform_indices = @transform_1, window_bounds = array<i64: 16, 1>}, {pipeline_mode = #tpu.pipeline_mode<synchronous>, transform_indices = @transform_2, window_bounds = array<i64: 64, 128>}, {pipeline_mode = #tpu.pipeline_mode<synchronous>, transform_indices = @transform_3, window_bounds = array<i64: 8, 128>}, {transform_indices = @transform_4, window_bounds = array<i64: 16, 128>}]} {
    %c0 = arith.constant 0 : index
    %c0_0 = arith.constant 0 : index
    %0 = vector.load %arg2[%c0, %c0_0] : memref<16x1xi32, #tpu.memory_space<vmem>>, vector<16x1xi32>
    %c0_1 = arith.constant 0 : index
    %c0_2 = arith.constant 0 : index
    %1 = vector.load %arg3[%c0_1, %c0_2] : memref<16x1xi32, #tpu.memory_space<vmem>>, vector<16x1xi32>
    %2 = tpu.iota {dimensions = array<i32: 1>} : vector<16x64xi32>
    %3 = vector.broadcast %0 : vector<16x1xi32> to vector<16x64xi32>
    %4 = arith.cmpi eq, %3, %2 : vector<16x64xi32>
    %5 = arith.extui %4 : vector<16x64xi1> to vector<16x64xi32>
    %6 = arith.sitofp %5 : vector<16x64xi32> to vector<16x64xf32>
    %7 = tpu.iota {dimensions = array<i32: 1>} : vector<16x8xi32>
    %8 = vector.broadcast %1 : vector<16x1xi32> to vector<16x8xi32>
    %9 = arith.cmpi eq, %8, %7 : vector<16x8xi32>
    %10 = arith.extui %9 : vector<16x8xi1> to vector<16x8xi32>
    %11 = arith.sitofp %10 : vector<16x8xi32> to vector<16x8xf32>
    %c0_3 = arith.constant 0 : index
    %c0_4 = arith.constant 0 : index
    %12 = vector.load %arg4[%c0_3, %c0_4] : memref<64x128xf32, #tpu.memory_space<vmem>>, vector<64x128xf32>
    %cst = arith.constant dense<0.000000e+00> : vector<16x128xf32>
    %13 = tpu.matmul %6, %12, %cst {dimension_numbers = #tpu.dot_dimension_numbers<[1], [0], [0], [1], [0, 0, 1, 1], [], []>, precision = #tpu.contract_precision<fp32>} : vector<16x64xf32>, vector<64x128xf32>, vector<16x128xf32> -> vector<16x128xf32>
    %c0_5 = arith.constant 0 : index
    %c0_6 = arith.constant 0 : index
    %14 = vector.load %arg5[%c0_5, %c0_6] : memref<8x128xf32, #tpu.memory_space<vmem>>, vector<8x128xf32>
    %cst_7 = arith.constant dense<0.000000e+00> : vector<16x128xf32>
    %15 = tpu.matmul %11, %14, %cst_7 {dimension_numbers = #tpu.dot_dimension_numbers<[1], [0], [0], [1], [0, 0, 1, 1], [], []>, precision = #tpu.contract_precision<fp32>} : vector<16x8xf32>, vector<8x128xf32>, vector<16x128xf32> -> vector<16x128xf32>
    %16 = arith.addf %13, %15 : vector<16x128xf32>
    %c16_i32 = arith.constant 16 : i32
    %17 = arith.muli %arg0, %c16_i32 : i32
    %18 = tpu.iota {dimensions = array<i32: 0>} : vector<16x128xi32>
    %19 = vector.broadcast %17 : i32 to vector<16x128xi32>
    %20 = arith.addi %19, %18 : vector<16x128xi32>
    %c128_i32 = arith.constant 128 : i32
    %21 = vector.broadcast %c128_i32 : i32 to vector<16x128xi32>
    %22 = arith.muli %20, %21 : vector<16x128xi32>
    %23 = tpu.iota {dimensions = array<i32: 1>} : vector<16x128xi32>
    %24 = arith.addi %22, %23 : vector<16x128xi32>
    %c0_8 = arith.constant 0 : index
    %25 = memref.load %arg1[%c0_8] : memref<1xi32, #tpu.memory_space<smem>>
    %c-1640531527_i32 = arith.constant -1640531527 : i32
    %26 = arith.muli %25, %c-1640531527_i32 : i32
    %27 = vector.broadcast %26 : i32 to vector<16x128xi32>
    %28 = arith.addi %24, %27 : vector<16x128xi32>
    %c16_i32_9 = arith.constant 16 : i32
    %29 = vector.broadcast %c16_i32_9 : i32 to vector<16x128xi32>
    %30 = arith.shrui %28, %29 : vector<16x128xi32>
    %31 = arith.xori %28, %30 : vector<16x128xi32>
    %c569420461_i32 = arith.constant 569420461 : i32
    %32 = vector.broadcast %c569420461_i32 : i32 to vector<16x128xi32>
    %33 = arith.muli %31, %32 : vector<16x128xi32>
    %c15_i32 = arith.constant 15 : i32
    %34 = vector.broadcast %c15_i32 : i32 to vector<16x128xi32>
    %35 = arith.shrui %33, %34 : vector<16x128xi32>
    %36 = arith.xori %33, %35 : vector<16x128xi32>
    %c1935289751_i32 = arith.constant 1935289751 : i32
    %37 = vector.broadcast %c1935289751_i32 : i32 to vector<16x128xi32>
    %38 = arith.muli %36, %37 : vector<16x128xi32>
    %c15_i32_10 = arith.constant 15 : i32
    %39 = vector.broadcast %c15_i32_10 : i32 to vector<16x128xi32>
    %40 = arith.shrui %38, %39 : vector<16x128xi32>
    %41 = arith.xori %38, %40 : vector<16x128xi32>
    %c8_i32 = arith.constant 8 : i32
    %42 = vector.broadcast %c8_i32 : i32 to vector<16x128xi32>
    %43 = arith.shrui %41, %42 : vector<16x128xi32>
    %c1677722_i32 = arith.constant 1677722 : i32
    %44 = vector.broadcast %c1677722_i32 : i32 to vector<16x128xi32>
    %45 = arith.cmpi sge, %43, %44 : vector<16x128xi32>
    %cst_11 = arith.constant 1.11111116 : f32
    %46 = vector.broadcast %cst_11 : f32 to vector<16x128xf32>
    %47 = arith.mulf %16, %46 : vector<16x128xf32>
    %cst_12 = arith.constant 0.000000e+00 : f32
    %48 = vector.broadcast %cst_12 : f32 to vector<16x128xf32>
    %49 = arith.select %45, %47, %48 : vector<16x128xi1>, vector<16x128xf32>
    %c0_13 = arith.constant 0 : index
    %c0_14 = arith.constant 0 : index
    %50 = vector.load %arg6[%c0_13, %c0_14] : memref<16x128xf32, #tpu.memory_space<vmem>>, vector<16x128xf32>
    tpu.vector_store %arg6[%c0_13, %c0_14], %49 {strides = array<i32>} : memref<16x128xf32, #tpu.memory_space<vmem>>, vector<16x128xf32>,
    return
  }
  func.func @transform_0(%arg0: i32, %arg1: memref<1xi32, #tpu.memory_space<smem>>) -> (i32, i32) {
    %c0_i32 = arith.constant 0 : i32
    %c0_i32_0 = arith.constant 0 : i32
    return %arg0, %c0_i32 : i32, i32
  }
  func.func @transform_1(%arg0: i32, %arg1: memref<1xi32, #tpu.memory_space<smem>>) -> (i32, i32) {
    %c0_i32 = arith.constant 0 : i32
    %c0_i32_0 = arith.constant 0 : i32
    return %arg0, %c0_i32 : i32, i32
  }
  func.func @transform_2(%arg0: i32, %arg1: memref<1xi32, #tpu.memory_space<smem>>) -> (i32, i32) {
    %c0_i32 = arith.constant 0 : i32
    %c0_i32_0 = arith.constant 0 : i32
    %c0_i32_1 = arith.constant 0 : i32
    return %c0_i32, %c0_i32_0 : i32, i32
  }
  func.func @transform_3(%arg0: i32, %arg1: memref<1xi32, #tpu.memory_space<smem>>) -> (i32, i32) {
    %c0_i32 = arith.constant 0 : i32
    %c0_i32_0 = arith.constant 0 : i32
    %c0_i32_1 = arith.constant 0 : i32
    return %c0_i32, %c0_i32_0 : i32, i32
  }
  func.func @transform_4(%arg0: i32, %arg1: memref<1xi32, #tpu.memory_space<smem>>) -> (i32, i32) {
    %c0_i32 = arith.constant 0 : i32
    %c0_i32_0 = arith.constant 0 : i32
    return %arg0, %c0_i32 : i32, i32
  }
}

</mosaic_0001>

<llo_original>
// kernel: tpu_custom_call.1
$region0: #{tpu_custom_call.1}
  #allocation0 [shape = 'u32[]', space=smem, size = 0x4, offset = 0x4, fixed_abs, tag = 'smem constant byte address 0x4 - core index']
  #allocation1 [shape = 'u32[72,128]{1,0:T(1,128)}', space=vmem, size = 0x9000, scoped, tag = 'internal scratch']
  #allocation2 [shape = 's32[1]{0}', space=sflag, size = 0x4, scoped, tag = 'scoped memory for tpu_custom_call.1']
  #allocation3 [shape = 's32[1]{0:T(128)S(6)}', space=smem, size = 0x200, scoped, tag = 'prefetched SMEM operand 0']
  %s0 = inlined_call_operand.<no memory space> [shape: s32[1], index: 0, kind: input, shape index: {}]
  %s1 = inlined_call_operand.vmem [shape: s32[16,1], index: 1, kind: input, shape index: {}]
  %s2 = inlined_call_operand.vmem [shape: s32[16,1], index: 2, kind: input, shape index: {}]
  %s3 = inlined_call_operand.hbm [shape: f32[64,128], index: 3, kind: input, shape index: {}]
  %s4 = inlined_call_operand.vmem [shape: f32[8,128], index: 4, kind: input, shape index: {}]
  %s5 = inlined_call_operand.hbm [shape: f32[16,128], index: 5, kind: output, shape index: {}]
  %s6 = sld [smem:[#allocation0]]
  $region30: #{tpu_custom_call.1} parent=0
    _
  %s8 = ssub.s32 1, %s6
  %s9 = scalar_select 0, %s8, %s6
  %10 = sst [smem:[#allocation3]] %s0
  $region1: #{tpu_custom_call.1} parent=0
    #allocation4 [shape = 'u8[32768]{0}', space=vmem, size = 0x8000, scoped, tag = 'input window, operand 3, single buffered']
    #allocation5 [shape = 's32[1]{0}', space=sflag, size = 0x4, scoped, tag = 'scoped memory for tpu_custom_call.1']
    #allocation6 [shape = 's32[1]{0}', space=sflag, size = 0x4, scoped, tag = 'scoped memory for tpu_custom_call.1']
    #allocation7 [shape = 'u8[8192]{0}', space=vmem, size = 0x2000, scoped, tag = 'output window, operand 0, single buffered']
    %11 = vsyncpa [#allocation5], 0
    %12 = vsyncpa [#allocation6], 0
    // Predicated region
    $region2: #{tpu_custom_call.1} parent=1 // pred_check
      _
    $region3: #{tpu_custom_call.1} parent=1 // pred_check_branch
      %14 = sbr.rel (0) target = $region5
    $region4: #{tpu_custom_call.1} parent=1 // pred_region
      _
    $region5: #{tpu_custom_call.1} parent=1 // pred_fallthru
      _
    // Predicated region
    $region6: #{tpu_custom_call.1} parent=1 // pred_check
      _
    $region7: #{tpu_custom_call.1} parent=1 // pred_check_branch
      %16 = sbr.rel (0) target = $region9
    $region8: #{tpu_custom_call.1} parent=1 // pred_region
      _
    $region9: #{tpu_custom_call.1} parent=1 // pred_fallthru
      _
    // Predicated region
    $region10: #{tpu_custom_call.1} parent=1 // pred_check
      _
    $region11: #{tpu_custom_call.1} parent=1 // pred_check_branch
      %18 = sbr.rel (0) target = $region13
    $region12: #{tpu_custom_call.1} parent=1 // pred_region
      %20 = vsyncadd [#allocation5], 0
      %s21 = sshll.u32 %s3, 4
      %s22 = int_to_ptr.hbm [resolvable:$true] %s21
      %s23 = sshll.u32 [#allocation4], 4
      %s24 = int_to_ptr.vmem [resolvable:$true] %s23
      %29 = dma.hbm_to_vmem [thread:$0]  %s22, 1024, %s24, [#allocation5], 128, 128, 8
    $region13: #{tpu_custom_call.1} parent=1 // pred_fallthru
      _
    // Predicated region
    $region14: #{tpu_custom_call.1} parent=1 // pred_check
      _
    $region15: #{tpu_custom_call.1} parent=1 // pred_check_branch
      %31 = sbr.rel (0) target = $region17
    $region16: #{tpu_custom_call.1} parent=1 // pred_region
      _
    $region17: #{tpu_custom_call.1} parent=1 // pred_fallthru
      _
    // Predicated region
    $region18: #{tpu_custom_call.1} parent=1 // pred_check
      _
    $region19: #{tpu_custom_call.1} parent=1 // pred_check_branch
      %33 = sbr.rel (0) target = $region21
    $region20: #{tpu_custom_call.1} parent=1 // pred_region
      %35 = dma.done [#allocation5], 1024
    $region21: #{tpu_custom_call.1} parent=1 // pred_fallthru
      _
    %v36 = vld [vmem:[%s1] sm:$0xff]
    %v37 = vld [vmem:[%s1 + $0x8] sm:$0xff]
    %v38 = vld [vmem:[%s2] sm:$0xff]
    %v39 = vld [vmem:[%s2 + $0x8] sm:$0xff]
    %v40 = vlaneseq
    %v41 = vand.u32 %v40, 127
    %42 = vset.pattern.permute.xlu0 0
    %43 = vperm.xlu0 %42, %v36
    %v44 = vpop.permute.xlu0 %43
    %45 = vset.pattern.permute.xlu0 0
    %46 = vperm.xlu0 %45, %v37
    %v47 = vpop.permute.xlu0 %46
    %vm48 = vcmp.eq.s32.totalorder %v44, %v41
    %vm49 = vcmp.eq.s32.totalorder %v47, %v41
    %v50 = vsel %vm48, 1, 0
    %v51 = vsel %vm49, 1, 0
    %v52 = vcvt.s32.f32 %v50
    %v53 = vcvt.s32.f32 %v51
    %54 = vset.pattern.permute.xlu0 0
    %55 = vperm.xlu0 %54, %v38
    %v56 = vpop.permute.xlu0 %55
    %57 = vset.pattern.permute.xlu0 0
    %58 = vperm.xlu0 %57, %v39
    %v59 = vpop.permute.xlu0 %58
    %vm60 = vcmp.eq.s32.totalorder %v56, %v41
    %vm61 = vcmp.eq.s32.totalorder %v59, %v41
    %v62 = vsel %vm60, 1, 0
    %v63 = vsel %vm61, 1, 0
    %v64 = vcvt.s32.f32 %v62
    %v65 = vcvt.s32.f32 %v63
    %v66 = vld [vmem:[#allocation4] sm:$0xff]
    %v67 = vld [vmem:[#allocation4 + $0x8] sm:$0xff]
    %v68 = vld [vmem:[#allocation4 + $0x10] sm:$0xff]
    %v69 = vld [vmem:[#allocation4 + $0x18] sm:$0xff]
    %v70 = vld [vmem:[#allocation4 + $0x20] sm:$0xff]
    %v71 = vld [vmem:[#allocation4 + $0x28] sm:$0xff]
    %v72 = vld [vmem:[#allocation4 + $0x30] sm:$0xff]
    %v73 = vld [vmem:[#allocation4 + $0x38] sm:$0xff]
    %v74 = vld [vmem:[%s4] sm:$0xff]
    %vm75 = vcmask 64512
    %v77 = vsel %vm75, %v64, 0
    %v80 = vsel %vm75, %v65, 0
    %82 = vmatpush.msra.mxu0 0.0
    %83 = vmatpush.msra.mxu0 0.0
    %84 = vmatpush.msra.mxu0 0.0
    %85 = vmatpush.msra.mxu0 0.0
    %86 = vmatpush.msra.mxu0 0.0
    %87 = vmatpush.msra.mxu0 0.0
    %88 = vmatpush.msra.mxu0 0.0
    %89 = vmatpush.msra.mxu0 0.0
    %90 = vmatpush.msra.mxu0 0.0
    %91 = vmatpush.msra.mxu0 0.0
    %92 = vmatpush.msra.mxu0 0.0
    %93 = vmatpush.msra.mxu0 0.0
    %94 = vmatpush.msra.mxu0 0.0
    %95 = vmatpush.msra.mxu0 0.0
    %96 = vmatpush.msra.mxu0 0.0
    %v97 = vand.u32 %v74, 4294901760
    %98 = vmatpush.msra.mxu0 %v97
    %v99 = vand.u32 %v77, 4294901760
    %v100 = vsub.f32 %v77, %v99
    %v101 = vand.u32 %v100, 4294901760
    %v102 = vsub.f32 %v100, %v101
    %v103 = vand.u32 %v102, 4294901760
    %104 = vmatmul.f32.gmra.mxu0 %v103
    %v105 = vpop.f32.mrf.mxu0
    %v106 = vadd.f32 0.0, %v105
    %v107 = vand.u32 %v80, 4294901760
    %v108 = vsub.f32 %v80, %v107
    %v109 = vand.u32 %v108, 4294901760
    %v110 = vsub.f32 %v108, %v109
    %v111 = vand.u32 %v110, 4294901760
    %112 = vmatmul.f32.gmra.mxu0 %v111
    %v113 = vpop.f32.mrf.mxu0
    %v114 = vadd.f32 0.0, %v113
    %115 = vdwg.mxu0
    %116 = vmatpush.msra.mxu0 0.0
    %117 = vmatpush.msra.mxu0 0.0
    %118 = vmatpush.msra.mxu0 0.0
    %119 = vmatpush.msra.mxu0 0.0
    %120 = vmatpush.msra.mxu0 0.0
    %121 = vmatpush.msra.mxu0 0.0
    %122 = vmatpush.msra.mxu0 0.0
    %123 = vmatpush.msra.mxu0 0.0
    %124 = vmatpush.msra.mxu0 0.0
    %125 = vmatpush.msra.mxu0 0.0
    %126 = vmatpush.msra.mxu0 0.0
    %127 = vmatpush.msra.mxu0 0.0
    %128 = vmatpush.msra.mxu0 0.0
    %129 = vmatpush.msra.mxu0 0.0
    %130 = vmatpush.msra.mxu0 0.0
    %v131 = vand.u32 %v74, 4294901760
    %v132 = vsub.f32 %v74, %v131
    %v133 = vand.u32 %v132, 4294901760
    %v134 = vsub.f32 %v132, %v133
    %v135 = vand.u32 %v134, 4294901760
    %136 = vmatpush.msra.mxu0 %v135
    %v137 = vand.u32 %v77, 4294901760
    %138 = vmatmul.f32.gmra.mxu0 %v137
    %v139 = vpop.f32.mrf.mxu0
    %v140 = vadd.f32 %v106, %v139
    %v141 = vand.u32 %v80, 4294901760
    %142 = vmatmul.f32.gmra.mxu0 %v141
    %v143 = vpop.f32.mrf.mxu0
    %v144 = vadd.f32 %v114, %v143
    %145 = vdwg.mxu0
    %146 = vmatpush.msra.mxu0 0.0
    %147 = vmatpush.msra.mxu0 0.0
    %148 = vmatpush.msra.mxu0 0.0
    %149 = vmatpush.msra.mxu0 0.0
    %150 = vmatpush.msra.mxu0 0.0
    %151 = vmatpush.msra.mxu0 0.0
    %152 = vmatpush.msra.mxu0 0.0
    %153 = vmatpush.msra.mxu0 0.0
    %154 = vmatpush.msra.mxu0 0.0
    %155 = vmatpush.msra.mxu0 0.0
    %156 = vmatpush.msra.mxu0 0.0
    %157 = vmatpush.msra.mxu0 0.0
    %158 = vmatpush.msra.mxu0 0.0
    %159 = vmatpush.msra.mxu0 0.0
    %160 = vmatpush.msra.mxu0 0.0
    %v161 = vand.u32 %v74, 4294901760
    %v162 = vsub.f32 %v74, %v161
    %163 = vmatpush.msra.mxu0 %v162
    %v164 = vand.u32 %v77, 4294901760
    %v165 = vsub.f32 %v77, %v164
    %166 = vmatmul.f32.gmra.mxu0 %v165
    %v167 = vpop.f32.mrf.mxu0
    %v168 = vadd.f32 %v140, %v167
    %v169 = vand.u32 %v80, 4294901760
    %v170 = vsub.f32 %v80, %v169
    %171 = vmatmul.f32.gmra.mxu0 %v170
    %v172 = vpop.f32.mrf.mxu0
    %v173 = vadd.f32 %v144, %v172
    %174 = vdwg.mxu0
    %175 = vmatpush.msra.mxu0 0.0
    %176 = vmatpush.msra.mxu0 0.0
    %177 = vmatpush.msra.mxu0 0.0
    %178 = vmatpush.msra.mxu0 0.0
    %179 = vmatpush.msra.mxu0 0.0
    %180 = vmatpush.msra.mxu0 0.0
    %181 = vmatpush.msra.mxu0 0.0
    %182 = vmatpush.msra.mxu0 0.0
    %183 = vmatpush.msra.mxu0 0.0
    %184 = vmatpush.msra.mxu0 0.0
    %185 = vmatpush.msra.mxu0 0.0
    %186 = vmatpush.msra.mxu0 0.0
    %187 = vmatpush.msra.mxu0 0.0
    %188 = vmatpush.msra.mxu0 0.0
    %189 = vmatpush.msra.mxu0 0.0
    %v190 = vand.u32 %v74, 4294901760
    %191 = vmatpush.msra.mxu0 %v190
    %v192 = vand.u32 %v77, 4294901760
    %v193 = vsub.f32 %v77, %v192
    %v194 = vand.u32 %v193, 4294901760
    %195 = vmatmul.f32.gmra.mxu0 %v194
    %v196 = vpop.f32.mrf.mxu0
    %v197 = vadd.f32 %v168, %v196
    %v198 = vand.u32 %v80, 4294901760
    %v199 = vsub.f32 %v80, %v198
    %v200 = vand.u32 %v199, 4294901760
    %201 = vmatmul.f32.gmra.mxu0 %v200
    %v202 = vpop.f32.mrf.mxu0
    %v203 = vadd.f32 %v173, %v202
    %204 = vdwg.mxu0
    %205 = vmatpush.msra.mxu0 0.0
    %206 = vmatpush.msra.mxu0 0.0
    %207 = vmatpush.msra.mxu0 0.0
    %208 = vmatpush.msra.mxu0 0.0
    %209 = vmatpush.msra.mxu0 0.0
    %210 = vmatpush.msra.mxu0 0.0
    %211 = vmatpush.msra.mxu0 0.0
    %212 = vmatpush.msra.mxu0 0.0
    %213 = vmatpush.msra.mxu0 0.0
    %214 = vmatpush.msra.mxu0 0.0
    %215 = vmatpush.msra.mxu0 0.0
    %216 = vmatpush.msra.mxu0 0.0
    %217 = vmatpush.msra.mxu0 0.0
    %218 = vmatpush.msra.mxu0 0.0
    %219 = vmatpush.msra.mxu0 0.0
    %v220 = vand.u32 %v74, 4294901760
    %v221 = vsub.f32 %v74, %v220
    %v222 = vand.u32 %v221, 4294901760
    %223 = vmatpush.msra.mxu0 %v222
    %v224 = vand.u32 %v77, 4294901760
    %225 = vmatmul.f32.gmra.mxu0 %v224
    %v226 = vpop.f32.mrf.mxu0
    %v227 = vadd.f32 %v197, %v226
    %v228 = vand.u32 %v80, 4294901760
    %229 = vmatmul.f32.gmra.mxu0 %v228
    %v230 = vpop.f32.mrf.mxu0
    %v231 = vadd.f32 %v203, %v230
    %232 = vdwg.mxu0
    %233 = vmatpush.msra.mxu0 0.0
    %234 = vmatpush.msra.mxu0 0.0
    %235 = vmatpush.msra.mxu0 0.0
    %236 = vmatpush.msra.mxu0 0.0
    %237 = vmatpush.msra.mxu0 0.0
    %238 = vmatpush.msra.mxu0 0.0
    %239 = vmatpush.msra.mxu0 0.0
    %240 = vmatpush.msra.mxu0 0.0
    %241 = vmatpush.msra.mxu0 0.0
    %242 = vmatpush.msra.mxu0 0.0
    %243 = vmatpush.msra.mxu0 0.0
    %244 = vmatpush.msra.mxu0 0.0
    %245 = vmatpush.msra.mxu0 0.0
    %246 = vmatpush.msra.mxu0 0.0
    %247 = vmatpush.msra.mxu0 0.0
    %v248 = vand.u32 %v74, 4294901760
    %249 = vmatpush.msra.mxu0 %v248
    %v250 = vand.u32 %v77, 4294901760
    %251 = vmatmul.f32.gmra.mxu0 %v250
    %v252 = vpop.f32.mrf.mxu0
    %v253 = vadd.f32 %v227, %v252
    %v254 = vand.u32 %v80, 4294901760
    %255 = vmatmul.f32.gmra.mxu0 %v254
    %v256 = vpop.f32.mrf.mxu0
    %v257 = vadd.f32 %v231, %v256
    %258 = vdwg.mxu0
    %vm259 = vcmask 523264
    %v261 = vsel %vm259, %v52, 0
    %v264 = vsel %vm259, %v53, 0
    %266 = vmatpush.msra.mxu0 0.0
    %267 = vmatpush.msra.mxu0 0.0
    %268 = vmatpush.msra.mxu0 0.0
    %269 = vmatpush.msra.mxu0 0.0
    %270 = vmatpush.msra.mxu0 0.0
    %271 = vmatpush.msra.mxu0 0.0
    %272 = vmatpush.msra.mxu0 0.0
    %273 = vmatpush.msra.mxu0 0.0
    %v274 = vand.u32 %v73, 4294901760
    %275 = vmatpush.msra.mxu0 %v274
    %v276 = vand.u32 %v72, 4294901760
    %277 = vmatpush.msra.mxu0 %v276
    %v278 = vand.u32 %v71, 4294901760
    %279 = vmatpush.msra.mxu0 %v278
    %v280 = vand.u32 %v70, 4294901760
    %281 = vmatpush.msra.mxu0 %v280
    %v282 = vand.u32 %v69, 4294901760
    %283 = vmatpush.msra.mxu0 %v282
    %v284 = vand.u32 %v68, 4294901760
    %285 = vmatpush.msra.mxu0 %v284
    %v286 = vand.u32 %v67, 4294901760
    %287 = vmatpush.msra.mxu0 %v286
    %v288 = vand.u32 %v66, 4294901760
    %289 = vmatpush.msra.mxu0 %v288
    %v290 = vand.u32 %v261, 4294901760
    %v291 = vsub.f32 %v261, %v290
    %v292 = vand.u32 %v291, 4294901760
    %v293 = vsub.f32 %v291, %v292
    %v294 = vand.u32 %v293, 4294901760
    %295 = vmatmul.f32.gmra.mxu0 %v294
    %v296 = vpop.f32.mrf.mxu0
    %v297 = vadd.f32 %v253, %v296
    %v298 = vand.u32 %v264, 4294901760
    %v299 = vsub.f32 %v264, %v298
    %v300 = vand.u32 %v299, 4294901760
    %v301 = vsub.f32 %v299, %v300
    %v302 = vand.u32 %v301, 4294901760
    %303 = vmatmul.f32.gmra.mxu0 %v302
    %v304 = vpop.f32.mrf.mxu0
    %v305 = vadd.f32 %v257, %v304
    %306 = vdwg.mxu0
    %307 = vmatpush.msra.mxu0 0.0
    %308 = vmatpush.msra.mxu0 0.0
    %309 = vmatpush.msra.mxu0 0.0
    %310 = vmatpush.msra.mxu0 0.0
    %311 = vmatpush.msra.mxu0 0.0
    %312 = vmatpush.msra.mxu0 0.0
    %313 = vmatpush.msra.mxu0 0.0
    %314 = vmatpush.msra.mxu0 0.0
    %v315 = vand.u32 %v73, 4294901760
    %v316 = vsub.f32 %v73, %v315
    %v317 = vand.u32 %v316, 4294901760
    %v318 = vsub.f32 %v316, %v317
    %v319 = vand.u32 %v318, 4294901760
    %320 = vmatpush.msra.mxu0 %v319
    %v321 = vand.u32 %v72, 4294901760
    %v322 = vsub.f32 %v72, %v321
    %v323 = vand.u32 %v322, 4294901760
    %v324 = vsub.f32 %v322, %v323
    %v325 = vand.u32 %v324, 4294901760
    %326 = vmatpush.msra.mxu0 %v325
    %v327 = vand.u32 %v71, 4294901760
    %v328 = vsub.f32 %v71, %v327
    %v329 = vand.u32 %v328, 4294901760
    %v330 = vsub.f32 %v328, %v329
    %v331 = vand.u32 %v330, 4294901760
    %332 = vmatpush.msra.mxu0 %v331
    %v333 = vand.u32 %v70, 4294901760
    %v334 = vsub.f32 %v70, %v333
    %v335 = vand.u32 %v334, 4294901760
    %v336 = vsub.f32 %v334, %v335
    %v337 = vand.u32 %v336, 4294901760
    %338 = vmatpush.msra.mxu0 %v337
    %v339 = vand.u32 %v69, 4294901760
    %v340 = vsub.f32 %v69, %v339
    %v341 = vand.u32 %v340, 4294901760
    %v342 = vsub.f32 %v340, %v341
    %v343 = vand.u32 %v342, 4294901760
    %344 = vmatpush.msra.mxu0 %v343
    %v345 = vand.u32 %v68, 4294901760
    %v346 = vsub.f32 %v68, %v345
    %v347 = vand.u32 %v346, 4294901760
    %v348 = vsub.f32 %v346, %v347
    %v349 = vand.u32 %v348, 4294901760
    %350 = vmatpush.msra.mxu0 %v349
    %v351 = vand.u32 %v67, 4294901760
    %v352 = vsub.f32 %v67, %v351
    %v353 = vand.u32 %v352, 4294901760
    %v354 = vsub.f32 %v352, %v353
    %v355 = vand.u32 %v354, 4294901760
    %356 = vmatpush.msra.mxu0 %v355
    %v357 = vand.u32 %v66, 4294901760
    %v358 = vsub.f32 %v66, %v357
    %v359 = vand.u32 %v358, 4294901760
    %v360 = vsub.f32 %v358, %v359
    %v361 = vand.u32 %v360, 4294901760
    %362 = vmatpush.msra.mxu0 %v361
    %v363 = vand.u32 %v261, 4294901760
    %364 = vmatmul.f32.gmra.mxu0 %v363
    %v365 = vpop.f32.mrf.mxu0
    %v366 = vadd.f32 %v297, %v365
    %v367 = vand.u32 %v264, 4294901760
    %368 = vmatmul.f32.gmra.mxu0 %v367
    %v369 = vpop.f32.mrf.mxu0
    %v370 = vadd.f32 %v305, %v369
    %371 = vdwg.mxu0
    %372 = vmatpush.msra.mxu0 0.0
    %373 = vmatpush.msra.mxu0 0.0
    %374 = vmatpush.msra.mxu0 0.0
    %375 = vmatpush.msra.mxu0 0.0
    %376 = vmatpush.msra.mxu0 0.0
    %377 = vmatpush.msra.mxu0 0.0
    %378 = vmatpush.msra.mxu0 0.0
    %379 = vmatpush.msra.mxu0 0.0
    %v380 = vand.u32 %v73, 4294901760
    %v381 = vsub.f32 %v73, %v380
    %382 = vmatpush.msra.mxu0 %v381
    %v383 = vand.u32 %v72, 4294901760
    %v384 = vsub.f32 %v72, %v383
    %385 = vmatpush.msra.mxu0 %v384
    %v386 = vand.u32 %v71, 4294901760
    %v387 = vsub.f32 %v71, %v386
    %388 = vmatpush.msra.mxu0 %v387
    %v389 = vand.u32 %v70, 4294901760
    %v390 = vsub.f32 %v70, %v389
    %391 = vmatpush.msra.mxu0 %v390
    %v392 = vand.u32 %v69, 4294901760
    %v393 = vsub.f32 %v69, %v392
    %394 = vmatpush.msra.mxu0 %v393
    %v395 = vand.u32 %v68, 4294901760
    %v396 = vsub.f32 %v68, %v395
    %397 = vmatpush.msra.mxu0 %v396
    %v398 = vand.u32 %v67, 4294901760
    %v399 = vsub.f32 %v67, %v398
    %400 = vmatpush.msra.mxu0 %v399
    %v401 = vand.u32 %v66, 4294901760
    %v402 = vsub.f32 %v66, %v401
    %403 = vmatpush.msra.mxu0 %v402
    %v404 = vand.u32 %v261, 4294901760
    %v405 = vsub.f32 %v261, %v404
    %406 = vmatmul.f32.gmra.mxu0 %v405
    %v407 = vpop.f32.mrf.mxu0
    %v408 = vadd.f32 %v366, %v407
    %v409 = vand.u32 %v264, 4294901760
    %v410 = vsub.f32 %v264, %v409
    %411 = vmatmul.f32.gmra.mxu0 %v410
    %v412 = vpop.f32.mrf.mxu0
    %v413 = vadd.f32 %v370, %v412
    %414 = vdwg.mxu0
    %415 = vmatpush.msra.mxu0 0.0
    %416 = vmatpush.msra.mxu0 0.0
    %417 = vmatpush.msra.mxu0 0.0
    %418 = vmatpush.msra.mxu0 0.0
    %419 = vmatpush.msra.mxu0 0.0
    %420 = vmatpush.msra.mxu0 0.0
    %421 = vmatpush.msra.mxu0 0.0
    %422 = vmatpush.msra.mxu0 0.0
    %v423 = vand.u32 %v73, 4294901760
    %424 = vmatpush.msra.mxu0 %v423
    %v425 = vand.u32 %v72, 4294901760
    %426 = vmatpush.msra.mxu0 %v425
    %v427 = vand.u32 %v71, 4294901760
    %428 = vmatpush.msra.mxu0 %v427
    %v429 = vand.u32 %v70, 4294901760
    %430 = vmatpush.msra.mxu0 %v429
    %v431 = vand.u32 %v69, 4294901760
    %432 = vmatpush.msra.mxu0 %v431
    %v433 = vand.u32 %v68, 4294901760
    %434 = vmatpush.msra.mxu0 %v433
    %v435 = vand.u32 %v67, 4294901760
    %436 = vmatpush.msra.mxu0 %v435
    %v437 = vand.u32 %v66, 4294901760
    %438 = vmatpush.msra.mxu0 %v437
    %v439 = vand.u32 %v261, 4294901760
    %v440 = vsub.f32 %v261, %v439
    %v441 = vand.u32 %v440, 4294901760
    %442 = vmatmul.f32.gmra.mxu0 %v441
    %v443 = vpop.f32.mrf.mxu0
    %v444 = vadd.f32 %v408, %v443
    %v445 = vand.u32 %v264, 4294901760
    %v446 = vsub.f32 %v264, %v445
    %v447 = vand.u32 %v446, 4294901760
    %448 = vmatmul.f32.gmra.mxu0 %v447
    %v449 = vpop.f32.mrf.mxu0
    %v450 = vadd.f32 %v413, %v449
    %451 = vdwg.mxu0
    %452 = vmatpush.msra.mxu0 0.0
    %453 = vmatpush.msra.mxu0 0.0
    %454 = vmatpush.msra.mxu0 0.0
    %455 = vmatpush.msra.mxu0 0.0
    %456 = vmatpush.msra.mxu0 0.0
    %457 = vmatpush.msra.mxu0 0.0
    %458 = vmatpush.msra.mxu0 0.0
    %459 = vmatpush.msra.mxu0 0.0
    %v460 = vand.u32 %v73, 4294901760
    %v461 = vsub.f32 %v73, %v460
    %v462 = vand.u32 %v461, 4294901760
    %463 = vmatpush.msra.mxu0 %v462
    %v464 = vand.u32 %v72, 4294901760
    %v465 = vsub.f32 %v72, %v464
    %v466 = vand.u32 %v465, 4294901760
    %467 = vmatpush.msra.mxu0 %v466
    %v468 = vand.u32 %v71, 4294901760
    %v469 = vsub.f32 %v71, %v468
    %v470 = vand.u32 %v469, 4294901760
    %471 = vmatpush.msra.mxu0 %v470
    %v472 = vand.u32 %v70, 4294901760
    %v473 = vsub.f32 %v70, %v472
    %v474 = vand.u32 %v473, 4294901760
    %475 = vmatpush.msra.mxu0 %v474
    %v476 = vand.u32 %v69, 4294901760
    %v477 = vsub.f32 %v69, %v476
    %v478 = vand.u32 %v477, 4294901760
    %479 = vmatpush.msra.mxu0 %v478
    %v480 = vand.u32 %v68, 4294901760
    %v481 = vsub.f32 %v68, %v480
    %v482 = vand.u32 %v481, 4294901760
    %483 = vmatpush.msra.mxu0 %v482
    %v484 = vand.u32 %v67, 4294901760
    %v485 = vsub.f32 %v67, %v484
    %v486 = vand.u32 %v485, 4294901760
    %487 = vmatpush.msra.mxu0 %v486
    %v488 = vand.u32 %v66, 4294901760
    %v489 = vsub.f32 %v66, %v488
    %v490 = vand.u32 %v489, 4294901760
    %491 = vmatpush.msra.mxu0 %v490
    %v492 = vand.u32 %v261, 4294901760
    %493 = vmatmul.f32.gmra.mxu0 %v492
    %v494 = vpop.f32.mrf.mxu0
    %v495 = vadd.f32 %v444, %v494
    %v496 = vand.u32 %v264, 4294901760
    %497 = vmatmul.f32.gmra.mxu0 %v496
    %v498 = vpop.f32.mrf.mxu0
    %v499 = vadd.f32 %v450, %v498
    %500 = vdwg.mxu0
    %501 = vmatpush.msra.mxu0 0.0
    %502 = vmatpush.msra.mxu0 0.0
    %503 = vmatpush.msra.mxu0 0.0
    %504 = vmatpush.msra.mxu0 0.0
    %505 = vmatpush.msra.mxu0 0.0
    %506 = vmatpush.msra.mxu0 0.0
    %507 = vmatpush.msra.mxu0 0.0
    %508 = vmatpush.msra.mxu0 0.0
    %v509 = vand.u32 %v73, 4294901760
    %510 = vmatpush.msra.mxu0 %v509
    %v511 = vand.u32 %v72, 4294901760
    %512 = vmatpush.msra.mxu0 %v511
    %v513 = vand.u32 %v71, 4294901760
    %514 = vmatpush.msra.mxu0 %v513
    %v515 = vand.u32 %v70, 4294901760
    %516 = vmatpush.msra.mxu0 %v515
    %v517 = vand.u32 %v69, 4294901760
    %518 = vmatpush.msra.mxu0 %v517
    %v519 = vand.u32 %v68, 4294901760
    %520 = vmatpush.msra.mxu0 %v519
    %v521 = vand.u32 %v67, 4294901760
    %522 = vmatpush.msra.mxu0 %v521
    %v523 = vand.u32 %v66, 4294901760
    %524 = vmatpush.msra.mxu0 %v523
    %v525 = vand.u32 %v261, 4294901760
    %526 = vmatmul.f32.gmra.mxu0 %v525
    %v527 = vpop.f32.mrf.mxu0
    %v528 = vadd.f32 %v495, %v527
    %v529 = vand.u32 %v264, 4294901760
    %530 = vmatmul.f32.gmra.mxu0 %v529
    %v531 = vpop.f32.mrf.mxu0
    %v532 = vadd.f32 %v499, %v531
    %533 = vdwg.mxu0
    %s534 = smul.u32 0, 16
    %v535 = vlaneseq
    %v536 = vshrl.u32 %v535, 7
    %v537 = vadd.s32 %v536, 8
    %v538 = vstv %s534
    %v539 = vadd.s32 %v538, %v536
    %v540 = vadd.s32 %v538, %v537
    %v541 = vmul.u32 %v539, 128
    %v542 = vmul.u32 %v540, 128
    %v543 = vadd.s32 %v541, %v41
    %v544 = vadd.s32 %v542, %v41
    %s545 = sld [smem:[#allocation3]]
    %s546 = smul.u32 %s545, 2654435769
    %v547 = vstv %s546
    %v548 = vadd.s32 %v543, %v547
    %v549 = vadd.s32 %v544, %v547
    %v550 = vshrl.u32 %v548, 16
    %v551 = vshrl.u32 %v549, 16
    %v552 = vxor.u32 %v548, %v550
    %v553 = vxor.u32 %v549, %v551
    %v554 = vmul.u32 %v552, 569420461
    %v555 = vmul.u32 %v553, 569420461
    %v556 = vshrl.u32 %v554, 15
    %v557 = vshrl.u32 %v555, 15
    %v558 = vxor.u32 %v554, %v556
    %v559 = vxor.u32 %v555, %v557
    %v560 = vmul.u32 %v558, 1935289751
    %v561 = vmul.u32 %v559, 1935289751
    %v562 = vshrl.u32 %v560, 15
    %v563 = vshrl.u32 %v561, 15
    %v564 = vxor.u32 %v560, %v562
    %v565 = vxor.u32 %v561, %v563
    %v566 = vshrl.u32 %v564, 8
    %v567 = vshrl.u32 %v565, 8
    %vm568 = vcmp.ge.s32.totalorder %v566, 1677722
    %vm569 = vcmp.ge.s32.totalorder %v567, 1677722
    %v570 = vmul.f32 %v528, 1.1111112
    %v571 = vmul.f32 %v532, 1.1111112
    %v572 = vsel %vm568, %v570, 0.0
    %v573 = vsel %vm569, %v571, 0.0
    %574 = vst [vmem:[#allocation7] sm:$0xff] %v572
    %575 = vst [vmem:[#allocation7 + $0x8] sm:$0xff] %v573
    // Predicated region
    $region22: #{tpu_custom_call.1} parent=1 // pred_check
      _
    $region23: #{tpu_custom_call.1} parent=1 // pred_check_branch
      %577 = sbr.rel (0) target = $region25
    $region24: #{tpu_custom_call.1} parent=1 // pred_region
      %579 = vsyncadd [#allocation6], 0
      %s580 = sshll.u32 [#allocation7], 4
      %s581 = int_to_ptr.vmem [resolvable:$true] %s580
      %s582 = sshll.u32 %s5, 4
      %s583 = int_to_ptr.hbm [resolvable:$true] %s582
      %588 = dma.vmem_to_hbm [thread:$0]  %s581, 256, %s583, [#allocation6], 128, 128, 8
    $region25: #{tpu_custom_call.1} parent=1 // pred_fallthru
      _
    // Predicated region
    $region26: #{tpu_custom_call.1} parent=1 // pred_check
      _
    $region27: #{tpu_custom_call.1} parent=1 // pred_check_branch
      %590 = sbr.rel (0) target = $region29
    $region28: #{tpu_custom_call.1} parent=1 // pred_region
      %592 = dma.done [#allocation6], 256
    $region29: #{tpu_custom_call.1} parent=1 // pred_fallthru
      _
    %593 = vsyncpa [#allocation5], 1
    %594 = vsyncpa [#allocation6], 1

</llo_original>
